<compile_context>
chip_gen: v6e
topology: v6e:2x2x1
jax: 0.10.0
libtpu: 0.0.40
codegen_flags: <defaults>
</compile_context>

<pallas_src>
import jax
import jax.numpy as jnp
from jax.experimental import pallas as pl
from jax.experimental.pallas import tpu as pltpu


def res_pool_kernel(x00_ref, x01_ref, x10_ref, x11_ref, w_ref, b_ref, o_ref):
    # Corner refs / o_ref: (C, TS); w_ref: (Cout, Cin); b_ref: (Cout, 1).
    x00 = x00_ref[...]                       # load once; reused by max-tree and conv

    # MaxPool2d(kernel_size=2, stride=2): elementwise max over the four corners.
    pooled = jnp.maximum(jnp.maximum(x00, x01_ref[...]),
                         jnp.maximum(x10_ref[...], x11_ref[...]))

    C = x00.shape[0]
    if C <= 16:
        # Tiny channel count: 1x1 stride-2 conv as C broadcast multiply-adds on the
        # VPU (outer products (C,1)*(1,TS)); keeps the lane dim dense, skips the MXU.
        conv = b_ref[...] + w_ref[:, 0:1] * x00[0:1, :]
        for c in range(1, C):
            conv = conv + w_ref[:, c:c + 1] * x00[c:c + 1, :]
    else:
        # Larger C: contract channels on the MXU, accumulate in f32.
        conv = jnp.dot(w_ref[...], x00,
                       preferred_element_type=jnp.float32) + b_ref[...]

    o_ref[...] = (pooled + conv).astype(o_ref.dtype)


def _pick_spatial_tile(S, C, itemsize, vmem_budget=8 * 1024 * 1024):
    """Largest lane-dense spatial tile that divides S and keeps the double-buffered
    working set (4 corner inputs + 1 output, 2 buffers each) well under budget."""
    for ts in (2048, 1024, 512, 256, 128):
        if S % ts == 0 and 10 * C * ts * itemsize <= vmem_budget:
            return ts
    return S  # small / odd spatial sizes: one full-extent block (still legal)


def my_res_pooling(x, w, b):
    """x: (B, C, H, W) NCHW; w: (C, C, 1, 1); b: (C,).  Returns (B, C, H//2, W//2)."""
    B, C, H, W = x.shape
    assert H % 2 == 0 and W % 2 == 0, "floor-mode MaxPool2d(2,2): expect even H, W"
    Ho, Wo = H // 2, W // 2
    S = Ho * Wo

    # ---- layout-only glue: four stride-2 corner views, kept in NCHW order ----
    x00 = x[:, :, 0::2, 0::2].reshape(B, C, S)
    x01 = x[:, :, 0::2, 1::2].reshape(B, C, S)
    x10 = x[:, :, 1::2, 0::2].reshape(B, C, S)
    x11 = x[:, :, 1::2, 1::2].reshape(B, C, S)

    w2 = w.reshape(C, C)       # (Cout, Cin)
    b2 = b.reshape(C, 1)       # broadcasts across the spatial (lane) dim

    TS = _pick_spatial_tile(S, C, x.dtype.itemsize)
    grid = (B, S // TS)

    corner_spec = pl.BlockSpec((None, C, TS), lambda bi, si: (bi, 0, si))
    param_w_spec = pl.BlockSpec((C, C), lambda bi, si: (0, 0))   # VMEM-resident
    param_b_spec = pl.BlockSpec((C, 1), lambda bi, si: (0, 0))   # VMEM-resident

    out_flat = pl.pallas_call(
        res_pool_kernel,
        out_shape=jax.ShapeDtypeStruct((B, C, S), x.dtype),
        grid=grid,
        in_specs=[corner_spec, corner_spec, corner_spec, corner_spec,
                  param_w_spec, param_b_spec],
        out_specs=pl.BlockSpec((None, C, TS), lambda bi, si: (bi, 0, si)),
        compiler_params=pltpu.CompilerParams(
            dimension_semantics=("parallel", "parallel"),
            vmem_limit_bytes=32 * 1024 * 1024),
    )(x00, x01, x10, x11, w2, b2)

    return out_flat.reshape(B, C, Ho, Wo)  # free reshape: already NCHW order


def reference(x, w, b):
    """Pure-JAX reference matching the PyTorch forward (even H, W)."""
    B, C, H, W = x.shape
    x00 = x[:, :, 0::2, 0::2]
    x01 = x[:, :, 0::2, 1::2]
    x10 = x[:, :, 1::2, 0::2]
    x11 = x[:, :, 1::2, 1::2]
    pooled = jnp.maximum(jnp.maximum(x00, x01), jnp.maximum(x10, x11))
    conv = jnp.einsum("oc,bchw->bohw", w.reshape(C, C), x00) + b[None, :, None, None]
    return pooled + conv


if __name__ == "__main__":
    B, C, H, W = 2, 4, 16, 16
    key = jax.random.PRNGKey(0)
    kx, kw, kb = jax.random.split(key, 3)

    x = jax.random.normal(kx, (B, C, H, W), dtype=jnp.float32)
    # Deterministic synthetic parameters matching nn.Conv2d(C, C, 1, stride=2).
    w = jax.random.normal(kw, (C, C, 1, 1), dtype=jnp.float32) * 0.1
    b = jax.random.normal(kb, (C,), dtype=jnp.float32) * 0.1

    out = jax.block_until_ready(jax.jit(my_res_pooling)(x, w, b))
    ref = reference(x, w, b)

    assert out.shape == (B, C, H // 2, W // 2), out.shape
    assert jnp.allclose(out, ref, atol=1e-5, rtol=1e-5), "mismatch vs reference"
    print("KERNEL_OK")
</pallas_src>

<mosaic_0001>
module attributes {stable_mosaic.version = 11 : i64} {
  func.func @res_pool_kernel(%arg0: i32, %arg1: i32, %arg2: memref<1x4x64xf32, #tpu.memory_space<vmem>>, %arg3: memref<1x4x64xf32, #tpu.memory_space<vmem>>, %arg4: memref<1x4x64xf32, #tpu.memory_space<vmem>>, %arg5: memref<1x4x64xf32, #tpu.memory_space<vmem>>, %arg6: memref<4x4xf32, #tpu.memory_space<vmem>>, %arg7: memref<4x1xf32, #tpu.memory_space<vmem>>, %arg8: memref<1x4x64xf32, #tpu.memory_space<vmem>>) attributes {dimension_semantics = [#tpu.dimension_semantics<parallel>, #tpu.dimension_semantics<parallel>], iteration_bounds = array<i64: 2, 1>, scalar_prefetch = 0 : i64, scratch_operands = 0 : i64, tpu.core_type = #tpu.core_type<tc>, window_params = [{transform_indices = @transform_0, window_bounds = array<i64: 1, 4, 64>}, {transform_indices = @transform_1, window_bounds = array<i64: 1, 4, 64>}, {transform_indices = @transform_2, window_bounds = array<i64: 1, 4, 64>}, {transform_indices = @transform_3, window_bounds = array<i64: 1, 4, 64>}, {pipeline_mode = #tpu.pipeline_mode<synchronous>, transform_indices = @transform_4, window_bounds = array<i64: 4, 4>}, {pipeline_mode = #tpu.pipeline_mode<synchronous>, transform_indices = @transform_5, window_bounds = array<i64: 4, 1>}, {transform_indices = @transform_6, window_bounds = array<i64: 1, 4, 64>}]} {
    %c0 = arith.constant 0 : index
    %c0_0 = arith.constant 0 : index
    %c0_1 = arith.constant 0 : index
    %0 = vector.load %arg2[%c0, %c0_0, %c0_1] : memref<1x4x64xf32, #tpu.memory_space<vmem>>, vector<1x4x64xf32>
    %1 = vector.shape_cast %0 : vector<1x4x64xf32> to vector<4x64xf32>
    %c0_2 = arith.constant 0 : index
    %c0_3 = arith.constant 0 : index
    %c0_4 = arith.constant 0 : index
    %2 = vector.load %arg3[%c0_2, %c0_3, %c0_4] : memref<1x4x64xf32, #tpu.memory_space<vmem>>, vector<1x4x64xf32>
    %3 = vector.shape_cast %2 : vector<1x4x64xf32> to vector<4x64xf32>
    %4 = arith.maximumf %1, %3 : vector<4x64xf32>
    %c0_5 = arith.constant 0 : index
    %c0_6 = arith.constant 0 : index
    %c0_7 = arith.constant 0 : index
    %5 = vector.load %arg4[%c0_5, %c0_6, %c0_7] : memref<1x4x64xf32, #tpu.memory_space<vmem>>, vector<1x4x64xf32>
    %6 = vector.shape_cast %5 : vector<1x4x64xf32> to vector<4x64xf32>
    %c0_8 = arith.constant 0 : index
    %c0_9 = arith.constant 0 : index
    %c0_10 = arith.constant 0 : index
    %7 = vector.load %arg5[%c0_8, %c0_9, %c0_10] : memref<1x4x64xf32, #tpu.memory_space<vmem>>, vector<1x4x64xf32>
    %8 = vector.shape_cast %7 : vector<1x4x64xf32> to vector<4x64xf32>
    %9 = arith.maximumf %6, %8 : vector<4x64xf32>
    %10 = arith.maximumf %4, %9 : vector<4x64xf32>
    %c0_11 = arith.constant 0 : index
    %c0_12 = arith.constant 0 : index
    %11 = vector.load %arg7[%c0_11, %c0_12] : memref<4x1xf32, #tpu.memory_space<vmem>>, vector<4x1xf32>
    %c0_13 = arith.constant 0 : index
    %c0_14 = arith.constant 0 : index
    %12 = vector.load %arg6[%c0_13, %c0_14] : memref<4x4xf32, #tpu.memory_space<vmem>>, vector<4x1xf32>
    %13 = vector.extract_strided_slice %1 {offsets = [0, 0], sizes = [1, 64], strides = [1, 1]} : vector<4x64xf32> to vector<1x64xf32>
    %14 = vector.broadcast %12 : vector<4x1xf32> to vector<4x64xf32>
    %15 = vector.broadcast %13 : vector<1x64xf32> to vector<4x64xf32>
    %16 = arith.mulf %14, %15 : vector<4x64xf32>
    %17 = vector.broadcast %11 : vector<4x1xf32> to vector<4x64xf32>
    %18 = arith.addf %17, %16 : vector<4x64xf32>
    %c0_15 = arith.constant 0 : index
    %c1 = arith.constant 1 : index
    %19 = vector.load %arg6[%c0_15, %c1] : memref<4x4xf32, #tpu.memory_space<vmem>>, vector<4x1xf32>
    %20 = vector.extract_strided_slice %1 {offsets = [1, 0], sizes = [1, 64], strides = [1, 1]} : vector<4x64xf32> to vector<1x64xf32>
    %21 = vector.broadcast %19 : vector<4x1xf32> to vector<4x64xf32>
    %22 = vector.broadcast %20 : vector<1x64xf32> to vector<4x64xf32>
    %23 = arith.mulf %21, %22 : vector<4x64xf32>
    %24 = arith.addf %18, %23 : vector<4x64xf32>
    %c0_16 = arith.constant 0 : index
    %c2 = arith.constant 2 : index
    %25 = vector.load %arg6[%c0_16, %c2] : memref<4x4xf32, #tpu.memory_space<vmem>>, vector<4x1xf32>
    %26 = vector.extract_strided_slice %1 {offsets = [2, 0], sizes = [1, 64], strides = [1, 1]} : vector<4x64xf32> to vector<1x64xf32>
    %27 = vector.broadcast %25 : vector<4x1xf32> to vector<4x64xf32>
    %28 = vector.broadcast %26 : vector<1x64xf32> to vector<4x64xf32>
    %29 = arith.mulf %27, %28 : vector<4x64xf32>
    %30 = arith.addf %24, %29 : vector<4x64xf32>
    %c0_17 = arith.constant 0 : index
    %c3 = arith.constant 3 : index
    %31 = vector.load %arg6[%c0_17, %c3] : memref<4x4xf32, #tpu.memory_space<vmem>>, vector<4x1xf32>
    %32 = vector.extract_strided_slice %1 {offsets = [3, 0], sizes = [1, 64], strides = [1, 1]} : vector<4x64xf32> to vector<1x64xf32>
    %33 = vector.broadcast %31 : vector<4x1xf32> to vector<4x64xf32>
    %34 = vector.broadcast %32 : vector<1x64xf32> to vector<4x64xf32>
    %35 = arith.mulf %33, %34 : vector<4x64xf32>
    %36 = arith.addf %30, %35 : vector<4x64xf32>
    %37 = arith.addf %10, %36 : vector<4x64xf32>
    %c0_18 = arith.constant 0 : index
    %c0_19 = arith.constant 0 : index
    %c0_20 = arith.constant 0 : index
    %38 = vector.load %arg8[%c0_18, %c0_19, %c0_20] : memref<1x4x64xf32, #tpu.memory_space<vmem>>, vector<1x4x64xf32>
    %39 = vector.shape_cast %38 : vector<1x4x64xf32> to vector<4x64xf32>
    %40 = vector.shape_cast %37 : vector<4x64xf32> to vector<1x4x64xf32>
    tpu.vector_store %arg8[%c0_18, %c0_19, %c0_20], %40 {strides = array<i32>} : memref<1x4x64xf32, #tpu.memory_space<vmem>>, vector<1x4x64xf32>,
    return
  }
  func.func @transform_0(%arg0: i32, %arg1: i32) -> (i32, i32, i32) {
    %c0_i32 = arith.constant 0 : i32
    %c0_i32_0 = arith.constant 0 : i32
    return %arg0, %c0_i32, %arg1 : i32, i32, i32
  }
  func.func @transform_1(%arg0: i32, %arg1: i32) -> (i32, i32, i32) {
    %c0_i32 = arith.constant 0 : i32
    %c0_i32_0 = arith.constant 0 : i32
    return %arg0, %c0_i32, %arg1 : i32, i32, i32
  }
  func.func @transform_2(%arg0: i32, %arg1: i32) -> (i32, i32, i32) {
    %c0_i32 = arith.constant 0 : i32
    %c0_i32_0 = arith.constant 0 : i32
    return %arg0, %c0_i32, %arg1 : i32, i32, i32
  }
  func.func @transform_3(%arg0: i32, %arg1: i32) -> (i32, i32, i32) {
    %c0_i32 = arith.constant 0 : i32
    %c0_i32_0 = arith.constant 0 : i32
    return %arg0, %c0_i32, %arg1 : i32, i32, i32
  }
  func.func @transform_4(%arg0: i32, %arg1: i32) -> (i32, i32) {
    %c0_i32 = arith.constant 0 : i32
    %c0_i32_0 = arith.constant 0 : i32
    %c0_i32_1 = arith.constant 0 : i32
    return %c0_i32, %c0_i32_0 : i32, i32
  }
  func.func @transform_5(%arg0: i32, %arg1: i32) -> (i32, i32) {
    %c0_i32 = arith.constant 0 : i32
    %c0_i32_0 = arith.constant 0 : i32
    %c0_i32_1 = arith.constant 0 : i32
    return %c0_i32, %c0_i32_0 : i32, i32
  }
  func.func @transform_6(%arg0: i32, %arg1: i32) -> (i32, i32, i32) {
    %c0_i32 = arith.constant 0 : i32
    %c0_i32_0 = arith.constant 0 : i32
    return %arg0, %c0_i32, %arg1 : i32, i32, i32
  }
}

</mosaic_0001>

<llo_original>
// kernel: my_res_pooling.1
$region0: #{my_res_pooling.1}
  #allocation0 [shape = 'u32[]', space=smem, size = 0x4, offset = 0x4, fixed_abs, tag = 'smem constant byte address 0x4 - core index']
  #allocation1 [shape = 'u32[144,128]{1,0:T(1,128)}', space=vmem, size = 0x12000, scoped, tag = 'internal scratch']
  %s0 = inlined_call_operand.vmem [shape: f32[2,4,64], index: 0, kind: input, shape index: {}]
  %s1 = inlined_call_operand.vmem [shape: f32[2,4,64], index: 1, kind: input, shape index: {}]
  %s2 = inlined_call_operand.vmem [shape: f32[2,4,64], index: 2, kind: input, shape index: {}]
  %s3 = inlined_call_operand.vmem [shape: f32[2,4,64], index: 3, kind: input, shape index: {}]
  %s4 = inlined_call_operand.vmem [shape: f32[4,4], index: 4, kind: input, shape index: {}]
  %s5 = inlined_call_operand.vmem [shape: f32[4,1], index: 5, kind: input, shape index: {}]
  %s6 = inlined_call_operand.vmem [shape: f32[2,4,64], index: 6, kind: output, shape index: {}]
  %s7 = sld [smem:[#allocation0]]
  $region57: #{my_res_pooling.1} parent=0
    _
  %s9 = ssub.s32 1, %s7
  %s10 = scalar_select 0, %s9, %s7
  loop: start=0, step=1, limit=4
  $region2: #{my_res_pooling.1} parent=0 // loop_pre_header
    _
  $region3: #{my_res_pooling.1} parent=0 // loop_header
    %s12 = sphi 0, %s16
    %p13 = scmp.ge.s32.totalorder %s12, 4
    %s19 = sphi 0, %s31
    %s20 = sphi 0, %s27
    %s21 = sphi 0, %s19
    %s22 = sphi 0, %s20
    %s23 = sphi 0, %s21
    %s24 = sphi 0, %s22
    %s36 = sphi 0, %s38
    %s39 = sphi 0, %s36
    %s40 = sphi 0, %s39
    %s56 = sphi 0, %s40
    %s64 = sphi 0, %s66
    %s67 = sphi 0, %s64
    %s68 = sphi 0, %s67
    %s84 = sphi 0, %s68
    %s92 = sphi 0, %s94
    %s95 = sphi 0, %s92
    %s96 = sphi 0, %s95
    %s112 = sphi 0, %s96
    %s120 = sphi 0, %s122
    %s123 = sphi 0, %s120
    %s124 = sphi 0, %s123
    %s140 = sphi 0, %s124
    %s144 = sphi 0, %s144
    %s146 = sphi 0, %s144
    %s147 = sphi 0, %s146
    %s161 = sphi 0, %s147
    %s165 = sphi 0, %s165
    %s167 = sphi 0, %s165
    %s168 = sphi 0, %s167
    %s182 = sphi 0, %s168
    %s190 = sphi 0, %s192
    %s193 = sphi 0, %s190
    %s194 = sphi 0, %s193
    %s210 = sphi 0, %s194
  $region4: #{my_res_pooling.1} parent=0 // loop_header_branch
    %15 = sbr.rel (%p13) target = $region8
  $region5: #{my_res_pooling.1} parent=0 // loop_body
    %s17 = ssub.s32 %s12, 1
    %s18 = ssub.s32 %s12, 2
    %s25 = sadd.s32 1, %s20
    %p26 = scmp.ge.s32.totalorder %s25, 1
    %s27 = scalar_select %p26, 0, %s25
    %s28 = sadd.s32 1, %s19
    %s29 = scalar_select %p26, %s28, %s19
    %p30 = scmp.ge.s32.totalorder %s29, 2
    %s31 = scalar_select %p30, 0, %s29
    %s32 = ssub.s32 %s19, %s31
    %s33 = ssub.s32 %s20, %s27
    %s34 = sor.u32 %s32, %s33
    %p35 = scmp.eq.s32.totalorder %s34, 0
    %s37 = sadd.s32 %s36, 1
    %s38 = scalar_select %p35, %s36, %s37
    %p41 = pneg %p35
    %p42 = scmp.eq.s32.totalorder %s12, 1
    %p43 = por %p41, %p42
    %p44 = scmp.ne.s32.totalorder %s36, %s39
    %p45 = scmp.eq.s32.totalorder %s12, 0
    %p46 = por %p44, %p45
    %p47 = scmp.ne.s32.totalorder %s36, %s39
    %p48 = scmp.eq.s32.totalorder %s17, 1
    %p49 = por %p47, %p48
    %p50 = scmp.ne.s32.totalorder %s39, %s40
    %p51 = scmp.eq.s32.totalorder %s17, 0
    %p52 = por %p50, %p51
    %p53 = scmp.ne.s32.totalorder %s39, %s40
    %p54 = scmp.eq.s32.totalorder %s18, 1
    %p55 = por %p53, %p54
    %p57 = scmp.ne.s32.totalorder %s40, %s56
    %p58 = scmp.eq.s32.totalorder %s18, 0
    %p59 = por %p57, %p58
    %s60 = ssub.s32 %s19, %s31
    %s61 = ssub.s32 %s20, %s27
    %s62 = sor.u32 %s60, %s61
    %p63 = scmp.eq.s32.totalorder %s62, 0
    %s65 = sadd.s32 %s64, 1
    %s66 = scalar_select %p63, %s64, %s65
    %p69 = pneg %p63
    %p70 = scmp.eq.s32.totalorder %s12, 1
    %p71 = por %p69, %p70
    %p72 = scmp.ne.s32.totalorder %s64, %s67
    %p73 = scmp.eq.s32.totalorder %s12, 0
    %p74 = por %p72, %p73
    %p75 = scmp.ne.s32.totalorder %s64, %s67
    %p76 = scmp.eq.s32.totalorder %s17, 1
    %p77 = por %p75, %p76
    %p78 = scmp.ne.s32.totalorder %s67, %s68
    %p79 = scmp.eq.s32.totalorder %s17, 0
    %p80 = por %p78, %p79
    %p81 = scmp.ne.s32.totalorder %s67, %s68
    %p82 = scmp.eq.s32.totalorder %s18, 1
    %p83 = por %p81, %p82
    %p85 = scmp.ne.s32.totalorder %s68, %s84
    %p86 = scmp.eq.s32.totalorder %s18, 0
    %p87 = por %p85, %p86
    %s88 = ssub.s32 %s19, %s31
    %s89 = ssub.s32 %s20, %s27
    %s90 = sor.u32 %s88, %s89
    %p91 = scmp.eq.s32.totalorder %s90, 0
    %s93 = sadd.s32 %s92, 1
    %s94 = scalar_select %p91, %s92, %s93
    %p97 = pneg %p91
    %p98 = scmp.eq.s32.totalorder %s12, 1
    %p99 = por %p97, %p98
    %p100 = scmp.ne.s32.totalorder %s92, %s95
    %p101 = scmp.eq.s32.totalorder %s12, 0
    %p102 = por %p100, %p101
    %p103 = scmp.ne.s32.totalorder %s92, %s95
    %p104 = scmp.eq.s32.totalorder %s17, 1
    %p105 = por %p103, %p104
    %p106 = scmp.ne.s32.totalorder %s95, %s96
    %p107 = scmp.eq.s32.totalorder %s17, 0
    %p108 = por %p106, %p107
    %p109 = scmp.ne.s32.totalorder %s95, %s96
    %p110 = scmp.eq.s32.totalorder %s18, 1
    %p111 = por %p109, %p110
    %p113 = scmp.ne.s32.totalorder %s96, %s112
    %p114 = scmp.eq.s32.totalorder %s18, 0
    %p115 = por %p113, %p114
    %s116 = ssub.s32 %s19, %s31
    %s117 = ssub.s32 %s20, %s27
    %s118 = sor.u32 %s116, %s117
    %p119 = scmp.eq.s32.totalorder %s118, 0
    %s121 = sadd.s32 %s120, 1
    %s122 = scalar_select %p119, %s120, %s121
    %p125 = pneg %p119
    %p126 = scmp.eq.s32.totalorder %s12, 1
    %p127 = por %p125, %p126
    %p128 = scmp.ne.s32.totalorder %s120, %s123
    %p129 = scmp.eq.s32.totalorder %s12, 0
    %p130 = por %p128, %p129
    %p131 = scmp.ne.s32.totalorder %s120, %s123
    %p132 = scmp.eq.s32.totalorder %s17, 1
    %p133 = por %p131, %p132
    %p134 = scmp.ne.s32.totalorder %s123, %s124
    %p135 = scmp.eq.s32.totalorder %s17, 0
    %p136 = por %p134, %p135
    %p137 = scmp.ne.s32.totalorder %s123, %s124
    %p138 = scmp.eq.s32.totalorder %s18, 1
    %p139 = por %p137, %p138
    %p141 = scmp.ne.s32.totalorder %s124, %s140
    %p142 = scmp.eq.s32.totalorder %s18, 0
    %p143 = por %p141, %p142
    %s145 = sadd.s32 %s144, 1
    %p148 = scmp.eq.s32.totalorder %s12, 1
    %p149 = scmp.ne.s32.totalorder %s144, %s146
    %p150 = scmp.eq.s32.totalorder %s12, 0
    %p151 = por %p149, %p150
    %p152 = scmp.ne.s32.totalorder %s144, %s146
    %p153 = scmp.eq.s32.totalorder %s17, 1
    %p154 = por %p152, %p153
    %p155 = scmp.ne.s32.totalorder %s146, %s147
    %p156 = scmp.eq.s32.totalorder %s17, 0
    %p157 = por %p155, %p156
    %p158 = scmp.ne.s32.totalorder %s146, %s147
    %p159 = scmp.eq.s32.totalorder %s18, 1
    %p160 = por %p158, %p159
    %p162 = scmp.ne.s32.totalorder %s147, %s161
    %p163 = scmp.eq.s32.totalorder %s18, 0
    %p164 = por %p162, %p163
    %s166 = sadd.s32 %s165, 1
    %p169 = scmp.eq.s32.totalorder %s12, 1
    %p170 = scmp.ne.s32.totalorder %s165, %s167
    %p171 = scmp.eq.s32.totalorder %s12, 0
    %p172 = por %p170, %p171
    %p173 = scmp.ne.s32.totalorder %s165, %s167
    %p174 = scmp.eq.s32.totalorder %s17, 1
    %p175 = por %p173, %p174
    %p176 = scmp.ne.s32.totalorder %s167, %s168
    %p177 = scmp.eq.s32.totalorder %s17, 0
    %p178 = por %p176, %p177
    %p179 = scmp.ne.s32.totalorder %s167, %s168
    %p180 = scmp.eq.s32.totalorder %s18, 1
    %p181 = por %p179, %p180
    %p183 = scmp.ne.s32.totalorder %s168, %s182
    %p184 = scmp.eq.s32.totalorder %s18, 0
    %p185 = por %p183, %p184
    %s186 = ssub.s32 %s19, %s31
    %s187 = ssub.s32 %s20, %s27
    %s188 = sor.u32 %s186, %s187
    %p189 = scmp.eq.s32.totalorder %s188, 0
    %s191 = sadd.s32 %s190, 1
    %s192 = scalar_select %p189, %s190, %s191
    %p195 = pneg %p189
    %p196 = scmp.eq.s32.totalorder %s12, 1
    %p197 = por %p195, %p196
    %p198 = scmp.ne.s32.totalorder %s190, %s193
    %p199 = scmp.eq.s32.totalorder %s12, 0
    %p200 = por %p198, %p199
    %p201 = scmp.ne.s32.totalorder %s190, %s193
    %p202 = scmp.eq.s32.totalorder %s17, 1
    %p203 = por %p201, %p202
    %p204 = scmp.ne.s32.totalorder %s193, %s194
    %p205 = scmp.eq.s32.totalorder %s17, 0
    %p206 = por %p204, %p205
    %p207 = scmp.ne.s32.totalorder %s193, %s194
    %p208 = scmp.eq.s32.totalorder %s18, 1
    %p209 = por %p207, %p208
    %p211 = scmp.ne.s32.totalorder %s194, %s210
    %p212 = scmp.eq.s32.totalorder %s18, 0
    %p213 = por %p211, %p212
    %p214 = scmp.le.s32.totalorder 1, %s12
    %p215 = scmp.lt.s32.totalorder %s12, 3
    %p216 = pnand %p214, %p215
    %p217 = pneg %p216
    // Predicated region
    $region9: #{my_res_pooling.1} parent=5 // pred_check
      _
    $region10: #{my_res_pooling.1} parent=5 // pred_check_branch
      %219 = sbr.rel (%p216) target = $region12
    $region11: #{my_res_pooling.1} parent=5 // pred_region
      %s220 = ssub.s32 %s12, 1
      // Predicated region
      $region13: #{my_res_pooling.1} parent=11 // pred_check
        %p221 = pneg %p157
      $region14: #{my_res_pooling.1} parent=11 // pred_check_branch
        %223 = sbr.rel (%p221) target = $region16
      $region15: #{my_res_pooling.1} parent=11 // pred_region
        _
      $region16: #{my_res_pooling.1} parent=11 // pred_fallthru
        _
      // Predicated region
      $region17: #{my_res_pooling.1} parent=11 // pred_check
        %p224 = pneg %p178
      $region18: #{my_res_pooling.1} parent=11 // pred_check_branch
        %226 = sbr.rel (%p224) target = $region20
      $region19: #{my_res_pooling.1} parent=11 // pred_region
        _
      $region20: #{my_res_pooling.1} parent=11 // pred_fallthru
        _
    $region12: #{my_res_pooling.1} parent=5 // pred_fallthru
      _
    %p227 = scmp.lt.s32.totalorder %s12, 2
    // Predicated region
    $region21: #{my_res_pooling.1} parent=5 // pred_check
      %p228 = pneg %p227
    $region22: #{my_res_pooling.1} parent=5 // pred_check_branch
      %230 = sbr.rel (%p228) target = $region24
    $region23: #{my_res_pooling.1} parent=5 // pred_region
      // Predicated region
      $region25: #{my_res_pooling.1} parent=23 // pred_check
        %p231 = pneg %p46
      $region26: #{my_res_pooling.1} parent=23 // pred_check_branch
        %233 = sbr.rel (%p231) target = $region28
      $region27: #{my_res_pooling.1} parent=23 // pred_region
        %p234 = scmp.lt.s32.totalorder %s19, 1
        %s235 = scalar_select %p234, %s19, 1
        %p236 = scmp.lt.s32.totalorder %s20, 0
        %s237 = scalar_select %p236, %s20, 0
        %s238 = sadd.s32 %s237, %s235
        %s239 = smul.addr %s238, 4
        %s240 = scalar_lea.vmem %s0, %s239
      $region28: #{my_res_pooling.1} parent=23 // pred_fallthru
        _
      // Predicated region
      $region29: #{my_res_pooling.1} parent=23 // pred_check
        %p241 = pneg %p74
      $region30: #{my_res_pooling.1} parent=23 // pred_check_branch
        %243 = sbr.rel (%p241) target = $region32
      $region31: #{my_res_pooling.1} parent=23 // pred_region
        %p244 = scmp.lt.s32.totalorder %s19, 1
        %s245 = scalar_select %p244, %s19, 1
        %p246 = scmp.lt.s32.totalorder %s20, 0
        %s247 = scalar_select %p246, %s20, 0
        %s248 = sadd.s32 %s247, %s245
        %s249 = smul.addr %s248, 4
        %s250 = scalar_lea.vmem %s1, %s249
      $region32: #{my_res_pooling.1} parent=23 // pred_fallthru
        _
      // Predicated region
      $region33: #{my_res_pooling.1} parent=23 // pred_check
        %p251 = pneg %p102
      $region34: #{my_res_pooling.1} parent=23 // pred_check_branch
        %253 = sbr.rel (%p251) target = $region36
      $region35: #{my_res_pooling.1} parent=23 // pred_region
        %p254 = scmp.lt.s32.totalorder %s19, 1
        %s255 = scalar_select %p254, %s19, 1
        %p256 = scmp.lt.s32.totalorder %s20, 0
        %s257 = scalar_select %p256, %s20, 0
        %s258 = sadd.s32 %s257, %s255
        %s259 = smul.addr %s258, 4
        %s260 = scalar_lea.vmem %s2, %s259
      $region36: #{my_res_pooling.1} parent=23 // pred_fallthru
        _
      // Predicated region
      $region37: #{my_res_pooling.1} parent=23 // pred_check
        %p261 = pneg %p130
      $region38: #{my_res_pooling.1} parent=23 // pred_check_branch
        %263 = sbr.rel (%p261) target = $region40
      $region39: #{my_res_pooling.1} parent=23 // pred_region
        %p264 = scmp.lt.s32.totalorder %s19, 1
        %s265 = scalar_select %p264, %s19, 1
        %p266 = scmp.lt.s32.totalorder %s20, 0
        %s267 = scalar_select %p266, %s20, 0
        %s268 = sadd.s32 %s267, %s265
        %s269 = smul.addr %s268, 4
        %s270 = scalar_lea.vmem %s3, %s269
      $region40: #{my_res_pooling.1} parent=23 // pred_fallthru
        _
    $region24: #{my_res_pooling.1} parent=5 // pred_fallthru
      _
    %p271 = scmp.le.s32.totalorder 1, %s12
    %p272 = scmp.lt.s32.totalorder %s12, 3
    %p273 = pnand %p271, %p272
    %p274 = pneg %p273
    // Predicated region
    $region41: #{my_res_pooling.1} parent=5 // pred_check
      _
    $region42: #{my_res_pooling.1} parent=5 // pred_check_branch
      %276 = sbr.rel (%p273) target = $region44
    $region43: #{my_res_pooling.1} parent=5 // pred_region
      %s277 = ssub.s32 %s12, 1
      %p278 = scmp.lt.s32.totalorder %s21, 1
      %s279 = scalar_select %p278, %s21, 1
      %p280 = scmp.lt.s32.totalorder %s22, 0
      %s281 = scalar_select %p280, %s22, 0
      %s282 = sadd.s32 %s281, %s279
      %s283 = smul.addr %s282, 4
      %s284 = scalar_lea.vmem %s0, %s283
      %p285 = pneg %p52
      %p286 = pneg %p49
      %p287 = scmp.lt.s32.totalorder %s21, 1
      %s288 = scalar_select %p287, %s21, 1
      %p289 = scmp.lt.s32.totalorder %s22, 0
      %s290 = scalar_select %p289, %s22, 0
      %s291 = sadd.s32 %s290, %s288
      %s292 = smul.addr %s291, 4
      %s293 = scalar_lea.vmem %s1, %s292
      %p294 = pneg %p80
      %p295 = pneg %p77
      %p296 = scmp.lt.s32.totalorder %s21, 1
      %s297 = scalar_select %p296, %s21, 1
      %p298 = scmp.lt.s32.totalorder %s22, 0
      %s299 = scalar_select %p298, %s22, 0
      %s300 = sadd.s32 %s299, %s297
      %s301 = smul.addr %s300, 4
      %s302 = scalar_lea.vmem %s2, %s301
      %p303 = pneg %p108
      %p304 = pneg %p105
      %p305 = scmp.lt.s32.totalorder %s21, 1
      %s306 = scalar_select %p305, %s21, 1
      %p307 = scmp.lt.s32.totalorder %s22, 0
      %s308 = scalar_select %p307, %s22, 0
      %s309 = sadd.s32 %s308, %s306
      %s310 = smul.addr %s309, 4
      %s311 = scalar_lea.vmem %s3, %s310
      %p312 = pneg %p136
      %p313 = pneg %p133
      %p314 = pneg %p157
      %p315 = pneg %p154
      %p316 = pneg %p178
      %p317 = pneg %p175
      %p318 = pneg %p206
      %p319 = pneg %p203
      %p320 = scmp.lt.s32.totalorder %s21, 1
      %s321 = scalar_select %p320, %s21, 1
      %p322 = scmp.lt.s32.totalorder %s22, 0
      %s323 = scalar_select %p322, %s22, 0
      %s324 = sadd.s32 %s323, %s321
      %s325 = smul.addr %s324, 4
      %s326 = scalar_lea.vmem %s6, %s325
      %p327 = scmp.lt.s32.totalorder %s21, 1
      %s328 = scalar_select %p327, %s21, 1
      %p329 = scmp.lt.s32.totalorder %s22, 0
      %s330 = scalar_select %p329, %s22, 0
      %s331 = sadd.s32 %s330, %s328
      %s332 = smul.addr %s331, 4
      %s333 = scalar_lea.vmem %s0, %s332
      %p334 = scmp.lt.s32.totalorder %s21, 1
      %s335 = scalar_select %p334, %s21, 1
      %p336 = scmp.lt.s32.totalorder %s22, 0
      %s337 = scalar_select %p336, %s22, 0
      %s338 = sadd.s32 %s337, %s335
      %s339 = smul.addr %s338, 4
      %s340 = scalar_lea.vmem %s1, %s339
      %p341 = scmp.lt.s32.totalorder %s21, 1
      %s342 = scalar_select %p341, %s21, 1
      %p343 = scmp.lt.s32.totalorder %s22, 0
      %s344 = scalar_select %p343, %s22, 0
      %s345 = sadd.s32 %s344, %s342
      %s346 = smul.addr %s345, 4
      %s347 = scalar_lea.vmem %s2, %s346
      %p348 = scmp.lt.s32.totalorder %s21, 1
      %s349 = scalar_select %p348, %s21, 1
      %p350 = scmp.lt.s32.totalorder %s22, 0
      %s351 = scalar_select %p350, %s22, 0
      %s352 = sadd.s32 %s351, %s349
      %s353 = smul.addr %s352, 4
      %s354 = scalar_lea.vmem %s3, %s353
      %p355 = scmp.lt.s32.totalorder %s21, 1
      %s356 = scalar_select %p355, %s21, 1
      %p357 = scmp.lt.s32.totalorder %s22, 0
      %s358 = scalar_select %p357, %s22, 0
      %s359 = sadd.s32 %s358, %s356
      %s360 = smul.addr %s359, 4
      %s361 = scalar_lea.vmem %s6, %s360
      %v362 = vld [vmem:[%s333] sm:$0xf]
      %v363 = vld [vmem:[%s340] sm:$0xf]
      %v364 = vmax.f32 %v362, %v363
      %v365 = vld [vmem:[%s347] sm:$0xf]
      %v366 = vld [vmem:[%s354] sm:$0xf]
      %v367 = vmax.f32 %v365, %v366
      %v368 = vmax.f32 %v364, %v367
      %v369 = vld [vmem:[%s5] sm:$0xf]
      %v370 = vld [vmem:[%s4] sm:$0xf]
      %372 = vset.pattern.permute.xlu0 0
      %373 = vperm.xlu0 %372, %v370
      %v374 = vpop.permute.xlu0 %373
      %v376 = vlaneseq
      %v377 = vshrl.u32 %v376, 7
      %v378 = vsub.s32 0, %v377
      %v379 = vrot.slane %v362, %v378
      %v380 = vmul.f32 %v374, %v379
      %382 = vset.pattern.permute.xlu0 0
      %383 = vperm.xlu0 %382, %v369
      %v384 = vpop.permute.xlu0 %383
      %v386 = vadd.f32 %v384, %v380
      %387 = vset.pattern.permute.xlu0 1
      %388 = vperm.xlu0 %387, %v370
      %v389 = vpop.permute.xlu0 %388
      %v391 = vlaneseq
      %v392 = vshrl.u32 %v391, 7
      %v393 = vsub.s32 1, %v392
      %v394 = vrot.slane %v362, %v393
      %v395 = vmul.f32 %v389, %v394
      %v396 = vadd.f32 %v386, %v395
      %397 = vset.pattern.permute.xlu0 2
      %398 = vperm.xlu0 %397, %v370
      %v399 = vpop.permute.xlu0 %398
      %v401 = vlaneseq
      %v402 = vshrl.u32 %v401, 7
      %v403 = vsub.s32 2, %v402
      %v404 = vrot.slane %v362, %v403
      %v405 = vmul.f32 %v399, %v404
      %v406 = vadd.f32 %v396, %v405
      %407 = vset.pattern.permute.xlu0 3
      %408 = vperm.xlu0 %407, %v370
      %v409 = vpop.permute.xlu0 %408
      %v411 = vlaneseq
      %v412 = vshrl.u32 %v411, 7
      %v413 = vsub.s32 3, %v412
      %v414 = vrot.slane %v362, %v413
      %v415 = vmul.f32 %v409, %v414
      %v416 = vadd.f32 %v406, %v415
      %v417 = vadd.f32 %v368, %v416
      %vm418 = vcmask 519168
      %419 = vst.msk [vmem:[%s361] sm:$0xf] %vm418, %v417
      %p420 = scmp.lt.s32.totalorder %s21, 1
      %s421 = scalar_select %p420, %s21, 1
      %p422 = scmp.lt.s32.totalorder %s22, 0
      %s423 = scalar_select %p422, %s22, 0
      %s424 = sadd.s32 %s423, %s421
      %s425 = smul.addr %s424, 4
      %s426 = scalar_lea.vmem %s6, %s425
      // Predicated region
      $region45: #{my_res_pooling.1} parent=43 // pred_check
        %p427 = pneg %p203
      $region46: #{my_res_pooling.1} parent=43 // pred_check_branch
        %429 = sbr.rel (%p427) target = $region48
      $region47: #{my_res_pooling.1} parent=43 // pred_region
        _
      $region48: #{my_res_pooling.1} parent=43 // pred_fallthru
        _
    $region44: #{my_res_pooling.1} parent=5 // pred_fallthru
      _
    %p430 = scmp.le.s32.totalorder 2, %s12
    // Predicated region
    $region49: #{my_res_pooling.1} parent=5 // pred_check
      %p431 = pneg %p430
    $region50: #{my_res_pooling.1} parent=5 // pred_check_branch
      %433 = sbr.rel (%p431) target = $region52
    $region51: #{my_res_pooling.1} parent=5 // pred_region
      %s434 = ssub.s32 %s12, 2
      // Predicated region
      $region53: #{my_res_pooling.1} parent=51 // pred_check
        %p435 = pneg %p209
      $region54: #{my_res_pooling.1} parent=51 // pred_check_branch
        %437 = sbr.rel (%p435) target = $region56
      $region55: #{my_res_pooling.1} parent=51 // pred_region
        %p438 = scmp.lt.s32.totalorder %s23, 1
        %s439 = scalar_select %p438, %s23, 1
        %p440 = scmp.lt.s32.totalorder %s24, 0
        %s441 = scalar_select %p440, %s24, 0
        %s442 = sadd.s32 %s441, %s439
        %s443 = smul.addr %s442, 4
        %s444 = scalar_lea.vmem %s6, %s443
      $region56: #{my_res_pooling.1} parent=51 // pred_fallthru
        _
    $region52: #{my_res_pooling.1} parent=5 // pred_fallthru
      _
  $region6: #{my_res_pooling.1} parent=0 // loop_footer
    %s16 = sadd.s32 1, %s12
  $region7: #{my_res_pooling.1} parent=0 // loop_footer_branch
    %11 = sbr.rel target = $region3
  $region8: #{my_res_pooling.1} parent=0 // loop_exit
    _

</llo_original>
